<compile_context>
chip_gen: v7x
topology: tpu7x:2x2x1
jax: 0.10.0
libtpu: 0.0.40
codegen_flags: <defaults>
</compile_context>

<pallas_src>
import functools

import jax
import jax.numpy as jnp
from jax.experimental import pallas as pl
from jax.experimental.pallas import tpu as pltpu


def _linear_clamp_kernel(x_ref, w_ref, o_ref, *, min_value, max_value):
    # Single MXU pass on the padded tile, f32 accumulate.
    v1 = jnp.dot(x_ref[...], w_ref[...], preferred_element_type=jnp.float32)
    # torch.clamp_min then torch.clamp_max (order matters: min_value > max_value
    # in the reference, so the result saturates at max_value).
    o_ref[...] = jnp.minimum(jnp.maximum(v1, min_value), max_value)


def _round_up(v, m):
    return (v + m - 1) // m * m


def linear_clamp(x, w, min_value=0.2, max_value=0.1):
    M, K = x.shape
    K2, N = w.shape
    assert K == K2, f"inner dims mismatch: {K} vs {K2}"

    # Pad to f32 sublane(8)/lane(128) alignment so the kernel uses dense
    # vector loads/stores.  Zero padding keeps the matmul result exact in the
    # logical (M, N) region.
    Mp = _round_up(M, 8)
    Kp = _round_up(K, 128)
    Np = _round_up(N, 128)

    x_pad = jnp.zeros((Mp, Kp), jnp.float32).at[:M, :K].set(x.astype(jnp.float32))
    w_pad = jnp.zeros((Kp, Np), jnp.float32).at[:K, :N].set(w.astype(jnp.float32))

    kernel = functools.partial(
        _linear_clamp_kernel,
        min_value=float(min_value),
        max_value=float(max_value),
    )

    out_pad = pl.pallas_call(
        kernel,
        out_shape=jax.ShapeDtypeStruct((Mp, Np), jnp.float32),
        in_specs=[
            pl.BlockSpec(memory_space=pltpu.MemorySpace.VMEM),
            pl.BlockSpec(memory_space=pltpu.MemorySpace.VMEM),
        ],
        out_specs=pl.BlockSpec(memory_space=pltpu.MemorySpace.VMEM),
    )(x_pad, w_pad)

    # Slice back to the logical shape outside the kernel.
    return out_pad[:M, :N]


if __name__ == "__main__":
    key = jax.random.PRNGKey(0)
    kx, kw = jax.random.split(key)

    # x1: (1, 10) as in the reference module; weight: (10, 30) so x @ W -> (1, 30)
    x1 = jax.random.normal(kx, (1, 10), dtype=jnp.float32)
    w = jax.random.normal(kw, (10, 30), dtype=jnp.float32)

    out = linear_clamp(x1, w, min_value=0.2, max_value=0.1)
    out = jax.block_until_ready(out)

    # reference check in plain JAX (same clamp order as torch)
    ref = jnp.minimum(jnp.maximum(x1 @ w, 0.2), 0.1)
    assert out.shape == (1, 30)
    assert jnp.allclose(out, ref, atol=1e-5), "mismatch vs reference"

    print("KERNEL_OK")
</pallas_src>

<mosaic_0001>
module attributes {stable_mosaic.version = 11 : i64} {
  func.func @_linear_clamp_kernel(%arg0: memref<8x128xf32, #tpu.memory_space<vmem>>, %arg1: memref<128x128xf32, #tpu.memory_space<vmem>>, %arg2: memref<8x128xf32, #tpu.memory_space<vmem>>) attributes {dimension_semantics = [], scalar_prefetch = 0 : i64, scratch_operands = 0 : i64, tpu.core_type = #tpu.core_type<tc>} {
    %c0 = arith.constant 0 : index
    %c0_0 = arith.constant 0 : index
    %0 = vector.load %arg0[%c0, %c0_0] : memref<8x128xf32, #tpu.memory_space<vmem>>, vector<8x128xf32>
    %c0_1 = arith.constant 0 : index
    %c0_2 = arith.constant 0 : index
    %1 = vector.load %arg1[%c0_1, %c0_2] : memref<128x128xf32, #tpu.memory_space<vmem>>, vector<128x128xf32>
    %cst = arith.constant dense<0.000000e+00> : vector<8x128xf32>
    %2 = tpu.matmul %0, %1, %cst {dimension_numbers = #tpu.dot_dimension_numbers<[1], [0], [0], [1], [0, 0, 1, 1], [], []>} : vector<8x128xf32>, vector<128x128xf32>, vector<8x128xf32> -> vector<8x128xf32>
    %cst_3 = arith.constant 2.000000e-01 : f32
    %3 = vector.broadcast %cst_3 : f32 to vector<8x128xf32>
    %4 = arith.maximumf %2, %3 : vector<8x128xf32>
    %cst_4 = arith.constant 1.000000e-01 : f32
    %5 = vector.broadcast %cst_4 : f32 to vector<8x128xf32>
    %6 = arith.minimumf %4, %5 : vector<8x128xf32>
    %c0_5 = arith.constant 0 : index
    %c0_6 = arith.constant 0 : index
    %7 = vector.load %arg2[%c0_5, %c0_6] : memref<8x128xf32, #tpu.memory_space<vmem>>, vector<8x128xf32>
    tpu.vector_store %arg2[%c0_5, %c0_6], %6 {strides = array<i32>} : memref<8x128xf32, #tpu.memory_space<vmem>>, vector<8x128xf32>,
    return
  }
}

</mosaic_0001>

<llo_original>
// kernel: tpu_custom_call.1
$region0: #{tpu_custom_call.1}
  #allocation0 [shape = 'u32[]', space=smem, size = 0x4, offset = 0x4, fixed_abs, tag = 'smem constant byte address 0x4 - core index']
  #allocation1 [shape = 'u32[144,128]{1,0:T(1,128)}', space=vmem, size = 0x12000, scoped, tag = 'internal scratch']
  %s0 = inlined_call_operand.hbm [shape: f32[8,128], index: 0, kind: input, shape index: {}]
  %s1 = inlined_call_operand.hbm [shape: f32[128,128], index: 1, kind: input, shape index: {}]
  %s2 = inlined_call_operand.hbm [shape: f32[8,128], index: 2, kind: output, shape index: {}]
  %s3 = sld [smem:[#allocation0]]
  $region26: #{tpu_custom_call.1} parent=0
    _
  %s5 = ssub.s32 1, %s3
  %s6 = scalar_select 0, %s5, %s3
  $region1: #{tpu_custom_call.1} parent=0
    #allocation2 [shape = 'u8[4096]{0}', space=vmem, size = 0x1000, scoped, tag = 'input window, operand 0, single buffered']
    #allocation3 [shape = 's32[1]{0}', space=sflag, size = 0x4, scoped, tag = 'scoped memory for tpu_custom_call.1']
    #allocation4 [shape = 's32[1]{0}', space=sflag, size = 0x4, scoped, tag = 'scoped memory for tpu_custom_call.1']
    #allocation5 [shape = 'u8[65536]{0}', space=vmem, size = 0x10000, scoped, tag = 'input window, operand 1, single buffered']
    #allocation6 [shape = 's32[1]{0}', space=sflag, size = 0x4, scoped, tag = 'scoped memory for tpu_custom_call.1']
    #allocation7 [shape = 'u8[4096]{0}', space=vmem, size = 0x1000, scoped, tag = 'output window, operand 0, single buffered']
    %7 = vsyncpa [#allocation3], 0
    %8 = vsyncpa [#allocation6], 0
    %9 = vsyncpa [#allocation4], 0
    // Predicated region
    $region2: #{tpu_custom_call.1} parent=1 // pred_check
      _
    $region3: #{tpu_custom_call.1} parent=1 // pred_check_branch
      %11 = sbr.rel (0) target = $region5
    $region4: #{tpu_custom_call.1} parent=1 // pred_region
      %s13 = ssub.s32 128, 128
      %14 = vsyncadd [#allocation3], %s13
      %s16 = sshll.u32 [#allocation2], 4
      %s17 = int_to_ptr.vmem [resolvable:$true] %s16
      %19 = dma.hbm_to_vmem [thread:$0]  %s0, 128, %s17, [#allocation3]
    $region5: #{tpu_custom_call.1} parent=1 // pred_fallthru
      _
    // Predicated region
    $region6: #{tpu_custom_call.1} parent=1 // pred_check
      _
    $region7: #{tpu_custom_call.1} parent=1 // pred_check_branch
      %21 = sbr.rel (0) target = $region9
    $region8: #{tpu_custom_call.1} parent=1 // pred_region
      %s23 = ssub.s32 2048, 2048
      %24 = vsyncadd [#allocation6], %s23
      %s25 = sshll.u32 [#allocation5], 4
      %s26 = int_to_ptr.vmem [resolvable:$true] %s25
      %31 = dma.hbm_to_vmem [thread:$0]  %s1, 2048, %s26, [#allocation6], 128, 128, 8
    $region9: #{tpu_custom_call.1} parent=1 // pred_fallthru
      _
    // Predicated region
    $region10: #{tpu_custom_call.1} parent=1 // pred_check
      _
    $region11: #{tpu_custom_call.1} parent=1 // pred_check_branch
      %33 = sbr.rel (0) target = $region13
    $region12: #{tpu_custom_call.1} parent=1 // pred_region
      %34 = dma.done [#allocation3], 128
    $region13: #{tpu_custom_call.1} parent=1 // pred_fallthru
      _
    // Predicated region
    $region14: #{tpu_custom_call.1} parent=1 // pred_check
      _
    $region15: #{tpu_custom_call.1} parent=1 // pred_check_branch
      %36 = sbr.rel (0) target = $region17
    $region16: #{tpu_custom_call.1} parent=1 // pred_region
      %37 = dma.done [#allocation6], 2048
    $region17: #{tpu_custom_call.1} parent=1 // pred_fallthru
      _
    %v38 = vld [vmem:[#allocation2] sm:$0xff]
    %v39 = vld [vmem:[#allocation5] sm:$0xff]
    %v40 = vld [vmem:[#allocation5 + $0x8] sm:$0xff]
    %v41 = vld [vmem:[#allocation5 + $0x10] sm:$0xff]
    %v42 = vld [vmem:[#allocation5 + $0x18] sm:$0xff]
    %v43 = vld [vmem:[#allocation5 + $0x20] sm:$0xff]
    %v44 = vld [vmem:[#allocation5 + $0x28] sm:$0xff]
    %v45 = vld [vmem:[#allocation5 + $0x30] sm:$0xff]
    %v46 = vld [vmem:[#allocation5 + $0x38] sm:$0xff]
    %v47 = vld [vmem:[#allocation5 + $0x40] sm:$0xff]
    %v48 = vld [vmem:[#allocation5 + $0x48] sm:$0xff]
    %v49 = vld [vmem:[#allocation5 + $0x50] sm:$0xff]
    %v50 = vld [vmem:[#allocation5 + $0x58] sm:$0xff]
    %v51 = vld [vmem:[#allocation5 + $0x60] sm:$0xff]
    %v52 = vld [vmem:[#allocation5 + $0x68] sm:$0xff]
    %v53 = vld [vmem:[#allocation5 + $0x70] sm:$0xff]
    %v54 = vld [vmem:[#allocation5 + $0x78] sm:$0xff]
    %55 = vmatprep.subr.mxu0 0.0
    %56 = vmatpush1.msra.mxu0 %v39
    %57 = vmatprep.subr.mxu0 0.0
    %58 = vmatpush1.msra.mxu0 %v40
    %59 = vmatprep.subr.mxu0 0.0
    %60 = vmatpush1.msra.mxu0 %v41
    %61 = vmatprep.subr.mxu0 0.0
    %62 = vmatpush1.msra.mxu0 %v42
    %63 = vmatprep.subr.mxu0 0.0
    %64 = vmatpush1.msra.mxu0 %v43
    %65 = vmatprep.subr.mxu0 0.0
    %66 = vmatpush1.msra.mxu0 %v44
    %67 = vmatprep.subr.mxu0 0.0
    %68 = vmatpush1.msra.mxu0 %v45
    %69 = vmatprep.subr.mxu0 0.0
    %70 = vmatpush1.msra.mxu0 %v46
    %71 = vmatprep.subr.mxu0 0.0
    %72 = vmatpush1.msra.mxu0 %v47
    %73 = vmatprep.subr.mxu0 0.0
    %74 = vmatpush1.msra.mxu0 %v48
    %75 = vmatprep.subr.mxu0 0.0
    %76 = vmatpush1.msra.mxu0 %v49
    %77 = vmatprep.subr.mxu0 0.0
    %78 = vmatpush1.msra.mxu0 %v50
    %79 = vmatprep.subr.mxu0 0.0
    %80 = vmatpush1.msra.mxu0 %v51
    %81 = vmatprep.subr.mxu0 0.0
    %82 = vmatpush1.msra.mxu0 %v52
    %83 = vmatprep.subr.mxu0 0.0
    %84 = vmatpush1.msra.mxu0 %v53
    %85 = vmatprep.subr.mxu0 0.0
    %86 = vmatpush1.msra.mxu0 %v54
    %87 = vmatprep.subr.mxu0 0.0
    %88 = vmatpush1.msra.mxu0 0.0
    %89 = vmatprep.subr.mxu0 0.0
    %90 = vmatpush1.msra.mxu0 0.0
    %91 = vmatprep.subr.mxu0 0.0
    %92 = vmatpush1.msra.mxu0 0.0
    %93 = vmatprep.subr.mxu0 0.0
    %94 = vmatpush1.msra.mxu0 0.0
    %95 = vmatprep.subr.mxu0 0.0
    %96 = vmatpush1.msra.mxu0 0.0
    %97 = vmatprep.subr.mxu0 0.0
    %98 = vmatpush1.msra.mxu0 0.0
    %99 = vmatprep.subr.mxu0 0.0
    %100 = vmatpush1.msra.mxu0 0.0
    %101 = vmatprep.subr.mxu0 0.0
    %102 = vmatpush1.msra.mxu0 0.0
    %103 = vmatprep.subr.mxu0 0.0
    %104 = vmatpush1.msra.mxu0 0.0
    %105 = vmatprep.subr.mxu0 0.0
    %106 = vmatpush1.msra.mxu0 0.0
    %107 = vmatprep.subr.mxu0 0.0
    %108 = vmatpush1.msra.mxu0 0.0
    %109 = vmatprep.subr.mxu0 0.0
    %110 = vmatpush1.msra.mxu0 0.0
    %111 = vmatprep.subr.mxu0 0.0
    %112 = vmatpush1.msra.mxu0 0.0
    %113 = vmatprep.subr.mxu0 0.0
    %114 = vmatpush1.msra.mxu0 0.0
    %115 = vmatprep.subr.mxu0 0.0
    %116 = vmatpush1.msra.mxu0 0.0
    %117 = vmatprep.subr.mxu0 0.0
    %118 = vmatpush1.msra.mxu0 0.0
    %119 = vmatprep.mubr.f32.mxu0 0.0
    %120 = vmatmul.mubr.f32.gmra.mrb[0].mxu0 %v38
    %v121 = vpop.f32.mrb[0].mxu0
    %v122 = vadd.f32 0.0, %v121
    %v123 = vpop.f32.mrb[0].mxu0
    %124 = vdwg.mxu0
    %v125 = vmax.f32 %v122, 0.2
    %v126 = vmin.f32 %v125, 0.1
    %127 = vst [vmem:[#allocation7] sm:$0xff] %v126
    // Predicated region
    $region18: #{tpu_custom_call.1} parent=1 // pred_check
      _
    $region19: #{tpu_custom_call.1} parent=1 // pred_check_branch
      %129 = sbr.rel (0) target = $region21
    $region20: #{tpu_custom_call.1} parent=1 // pred_region
      %s131 = ssub.s32 128, 128
      %132 = vsyncadd [#allocation4], %s131
      %s134 = sshll.u32 [#allocation7], 4
      %s135 = int_to_ptr.vmem [resolvable:$true] %s134
      %137 = dma.vmem_to_hbm [thread:$0]  %s135, 128, %s2, [#allocation4]
    $region21: #{tpu_custom_call.1} parent=1 // pred_fallthru
      _
    // Predicated region
    $region22: #{tpu_custom_call.1} parent=1 // pred_check
      _
    $region23: #{tpu_custom_call.1} parent=1 // pred_check_branch
      %139 = sbr.rel (0) target = $region25
    $region24: #{tpu_custom_call.1} parent=1 // pred_region
      %140 = dma.done [#allocation4], 128
    $region25: #{tpu_custom_call.1} parent=1 // pred_fallthru
      _
    %141 = vsyncpa [#allocation3], 1
    %142 = vsyncpa [#allocation6], 1
    %143 = vsyncpa [#allocation4], 1

</llo_original>
